<compile_context>
chip_gen: v6e
topology: v6e:2x2x1
jax: 0.10.0
libtpu: 0.0.40
codegen_flags: <defaults>
</compile_context>

<pallas_src>
import math
import functools

import jax
import jax.numpy as jnp
from jax.experimental import pallas as pl
from jax.experimental.pallas import tpu as pltpu


_H = 64            # hidden width of each head
_HF = 2 * _H       # fused hidden width (actor | critic) = 128 -> full lane / MXU occupancy
_LANE = 128        # TPU lane width; batch tiles are multiples of this


def _round_up(x, m):
    return (x + m - 1) // m * m


def _tensorcores_per_chip():
    """2 TensorCores per chip on v4/v5p/v7x (megacore), 1 on v5e/v6e."""
    try:
        kind = jax.devices()[0].device_kind.lower()
    except Exception:
        return 1
    if "v7" in kind or "v4" in kind or "v5p" in kind:
        return 2
    return 1


def _choose_batch_tile(batch, block_b, num_cores):
    """Lane-aligned batch tile: one big step on single-TC chips, >=2 steps on 2-TC chips."""
    b_lane = _round_up(max(batch, 1), _LANE)
    cap = max(_LANE, (block_b // _LANE) * _LANE)     # force a multiple of 128, at least 128
    tb = min(cap, b_lane)
    if num_cores >= 2:
        half = (b_lane // (2 * _LANE)) * _LANE
        if half >= _LANE:                            # enough batch to give both cores work
            tb = min(tb, half)
    return tb


def _fused_ac_kernel(xT_ref, aT_ref, w1T_ref, w2T_ref, w3T_ref, consts_ref, out_ref):
    """One batch tile, feature-major layout (batch on the lane axis).

    xT_ref    : (k1, TB)   bf16  packed state^T (rows >= S are zero padding)
    aT_ref    : (A,  TB)   f32   action^T
    w1T_ref   : (128, k1)  bf16  fused [actor|critic] layer-1 weight, transposed
    w2T_ref   : (128, 128) bf16  block-diagonal layer-2 weight, transposed
    w3T_ref   : (A+1, 128) bf16  fused layer-3 weight, transposed (rows 0..A-1 = mu, row A = v)
    consts_ref: (128, 5)   f32   columns [b1 | b2 | b3 | 1/var | logp_const]
    out_ref   : (2, TB)    f32   row 0 = log-prob, row 1 = state value
    """
    A = aT_ref.shape[0]

    b1 = consts_ref[:, 0:1]                        # (128, 1)
    b2 = consts_ref[:, 1:2]                        # (128, 1)
    b3 = consts_ref[0:A + 1, 2:3]                  # (A+1, 1)
    inv_var = consts_ref[0:A, 3:4]                 # (A, 1)
    lp_const = consts_ref[0:1, 4:5]                # (1, 1)

    # --- fused actor|critic MLP: 3 MXU matmuls (bf16 inputs, f32 accumulation), batch on N ---
    h = jnp.tanh(jnp.dot(w1T_ref[...], xT_ref[...],
                         preferred_element_type=jnp.float32) + b1)             # (128, TB)
    h = jnp.tanh(jnp.dot(w2T_ref[...], h.astype(jnp.bfloat16),
                         preferred_element_type=jnp.float32) + b2)             # (128, TB)
    z = jnp.dot(w3T_ref[...], h.astype(jnp.bfloat16),
                preferred_element_type=jnp.float32) + b3                       # (A+1, TB)

    mu = jnp.tanh(z[0:A, :])                       # actor head (final Tanh), (A, TB)
    v = z[A:A + 1, :]                              # critic head (no activation), (1, TB)

    # --- diagonal MultivariateNormal log_prob (f32; 1/var & constant hoisted to wrapper) ---
    diff = aT_ref[...] - mu                                              # (A, TB) f32
    maha = jnp.sum(diff * diff * inv_var, axis=0, keepdims=True)         # (1, TB)
    logp = lp_const - 0.5 * maha                                         # (1, TB)

    # Lane-dense stores: each row is TB contiguous lanes -> unmasked vst + dense writeback DMA.
    out_ref[0:1, :] = logp
    out_ref[1:2, :] = v


@functools.partial(jax.jit, static_argnames=("block_b",))
def actor_critic_evaluate(state, action, action_var, params, *, block_b=2048):
    """ActorCritic.evaluate (continuous FC branch).

    Returns (action_logprobs (B,), state_values (B,1), dist_entropy (B,)).
    """
    B, S = state.shape
    if action.ndim == 1:                 # mirrors the action_dim==1 reshape in the PyTorch module
        action = action[:, None]
    A = action.shape[-1]
    if A + 1 > _HF:
        raise ValueError(f"action_dim={A} too large for the packed layout (max {_HF - 1})")

    f32, bf16 = jnp.float32, jnp.bfloat16

    # ---- fuse actor & critic parameters, transposed (constant-folded under jit) ----
    zh = jnp.zeros((_H, _H), f32)
    w1 = jnp.concatenate([params["w1a"], params["w1c"]], axis=1)                       # (S, 128)
    w2 = jnp.block([[params["w2a"], zh], [zh, params["w2c"]]])                         # (128, 128)
    w3 = jnp.block([[params["w3a"], jnp.zeros((_H, 1), f32)],
                    [jnp.zeros((_H, A), f32), params["w3c"]]])                         # (128, A+1)
    b1 = jnp.concatenate([params["b1a"], params["b1c"]])                               # (128,)
    b2 = jnp.concatenate([params["b2a"], params["b2c"]])                               # (128,)
    b3 = jnp.concatenate([params["b3a"], params["b3c"]])                               # (A+1,)

    k1 = _round_up(S, 16)                # bf16 sublane-tile aligned contraction dim
    w1T = jnp.zeros((_HF, k1), f32).at[:, :S].set(w1.T)                                # (128, k1)
    w2T = w2.T                                                                         # (128, 128)
    w3T = w3.T                                                                         # (A+1, 128)

    inv_var = 1.0 / action_var                                                         # hoisted
    sum_log_var = jnp.sum(jnp.log(action_var))
    lp_const = -0.5 * (sum_log_var + A * math.log(2.0 * math.pi))

    consts = jnp.zeros((_HF, 5), f32)
    consts = consts.at[:, 0].set(b1)
    consts = consts.at[:, 1].set(b2)
    consts = consts.at[:A + 1, 2].set(b3)
    consts = consts.at[:A, 3].set(inv_var)
    consts = consts.at[0, 4].set(lp_const)

    # ---- batch tiling: 128-lane multiples, generation-aware step count ----
    tb = _choose_batch_tile(B, block_b, _tensorcores_per_chip())
    b_pad = _round_up(B, tb)

    # Feature-major (transposed) streamed operands: every DMA row is a dense tb-lane run.
    xT = jnp.zeros((k1, b_pad), bf16).at[:S, :B].set(state.T.astype(bf16))
    aT = jnp.zeros((A, b_pad), f32).at[:, :B].set(action.T)

    grid = (b_pad // tb,)
    out = pl.pallas_call(
        _fused_ac_kernel,
        out_shape=jax.ShapeDtypeStruct((2, b_pad), jnp.float32),
        grid_spec=pltpu.PrefetchScalarGridSpec(
            num_scalar_prefetch=0,
            grid=grid,
            in_specs=[
                pl.BlockSpec((k1, tb), lambda i: (0, i)),        # state^T tile   (streams)
                pl.BlockSpec((A, tb), lambda i: (0, i)),         # action^T tile  (streams)
                pl.BlockSpec((_HF, k1), lambda i: (0, 0)),       # fused W1^T     (resident)
                pl.BlockSpec((_HF, _HF), lambda i: (0, 0)),      # fused W2^T     (resident)
                pl.BlockSpec((A + 1, _HF), lambda i: (0, 0)),    # fused W3^T     (resident)
                pl.BlockSpec((_HF, 5), lambda i: (0, 0)),        # packed consts  (resident)
            ],
            out_specs=pl.BlockSpec((2, tb), lambda i: (0, i)),   # [logp ; value], lane-dense
        ),
        compiler_params=pltpu.CompilerParams(
            dimension_semantics=("parallel",),                   # megacore-split the batch grid
        ),
    )(
        xT,
        aT,
        w1T.astype(bf16),
        w2T.astype(bf16),
        w3T.astype(bf16),
        consts,
    )

    logp = out[0, :B]
    value = out[1, :B][:, None]
    # Entropy of a diag-MVN is batch-invariant: compute once, broadcast in the wrapper.
    ent_scalar = 0.5 * A * (1.0 + math.log(2.0 * math.pi)) + 0.5 * sum_log_var
    ent = jnp.broadcast_to(ent_scalar, (B,))
    return logp, value, ent


# ----------------------------- test / reference utilities -----------------------------

def _init_linear(key, fan_in, fan_out):
    # Deterministic init mimicking torch.nn.Linear default (uniform +/- 1/sqrt(fan_in)).
    kw, kb = jax.random.split(key)
    bound = 1.0 / math.sqrt(fan_in)
    w = jax.random.uniform(kw, (fan_in, fan_out), jnp.float32, -bound, bound)
    b = jax.random.uniform(kb, (fan_out,), jnp.float32, -bound, bound)
    return w, b


def make_params(key, state_dim, action_dim, hidden=_H):
    keys = jax.random.split(key, 6)
    w1a, b1a = _init_linear(keys[0], state_dim, hidden)
    w2a, b2a = _init_linear(keys[1], hidden, hidden)
    w3a, b3a = _init_linear(keys[2], hidden, action_dim)
    w1c, b1c = _init_linear(keys[3], state_dim, hidden)
    w2c, b2c = _init_linear(keys[4], hidden, hidden)
    w3c, b3c = _init_linear(keys[5], hidden, 1)
    return dict(w1a=w1a, b1a=b1a, w2a=w2a, b2a=b2a, w3a=w3a, b3a=b3a,
                w1c=w1c, b1c=b1c, w2c=w2c, b2c=b2c, w3c=w3c, b3c=b3c)


def reference_evaluate(state, action, action_var, p, *, bf16_mxu=True):
    """Pure-JAX reference.

    bf16_mxu=True : same bf16-input / f32-accumulate MXU recipe as the kernel (tight check).
    bf16_mxu=False: full-f32 math == the PyTorch module's semantics (loose parity check; the
                    kernel's bf16 MXU inputs give ~1e-3 abs error in mu, which the Mahalanobis
                    term of log_prob amplifies to up to ~1e-1 abs).
    """
    if bf16_mxu:
        def dot(a, b):
            return jnp.dot(a.astype(jnp.bfloat16), b.astype(jnp.bfloat16),
                           preferred_element_type=jnp.float32)
    else:
        def dot(a, b):
            return jnp.dot(a, b, precision=jax.lax.Precision.HIGHEST)

    def mlp(x, w1, b1, w2, b2, w3, b3):
        h = jnp.tanh(dot(x, w1) + b1)
        h = jnp.tanh(dot(h, w2) + b2)
        return dot(h, w3) + b3

    mu = jnp.tanh(mlp(state, p["w1a"], p["b1a"], p["w2a"], p["b2a"], p["w3a"], p["b3a"]))
    v = mlp(state, p["w1c"], p["b1c"], p["w2c"], p["b2c"], p["w3c"], p["b3c"])

    d = mu.shape[-1]
    log_2pi = math.log(2.0 * math.pi)
    diff = action - mu
    maha = jnp.sum(diff * diff / action_var, axis=-1)
    logp = -0.5 * (maha + jnp.sum(jnp.log(action_var)) + d * log_2pi)
    ent = 0.5 * d * (1.0 + log_2pi) + 0.5 * jnp.sum(jnp.log(action_var))
    ent = jnp.broadcast_to(ent, logp.shape)
    return logp, v, ent


if __name__ == "__main__":
    key = jax.random.PRNGKey(0)
    k_param, k_state, k_action = jax.random.split(key, 3)

    batch = 200          # not a multiple of the 128-lane tile -> exercises padding + 2-step grid
    state_dim = 16
    action_dim = 4
    action_std_init = 0.6

    params = make_params(k_param, state_dim, action_dim)
    state = jax.random.normal(k_state, (batch, state_dim), jnp.float32)
    action = jax.random.normal(k_action, (batch, action_dim), jnp.float32)
    action_var = jnp.full((action_dim,), action_std_init * action_std_init, jnp.float32)

    logp, value, ent = actor_critic_evaluate(state, action, action_var, params, block_b=128)
    jax.block_until_ready((logp, value, ent))

    assert logp.shape == (batch,) and value.shape == (batch, 1) and ent.shape == (batch,)

    # Tight check against a reference that uses the kernel's bf16-in / f32-accumulate MXU recipe.
    r_logp, r_v, r_ent = reference_evaluate(state, action, action_var, params, bf16_mxu=True)
    assert jnp.allclose(logp, r_logp, atol=2e-3, rtol=2e-3)
    assert jnp.allclose(value, r_v, atol=2e-3, rtol=2e-3)
    assert jnp.allclose(ent, r_ent, atol=1e-5, rtol=1e-5)

    # Loose parity check against the true f32 module semantics (documents the bf16 MXU error).
    f_logp, f_v, f_ent = reference_evaluate(state, action, action_var, params, bf16_mxu=False)
    assert jnp.allclose(logp, f_logp, atol=3e-1, rtol=5e-2)
    assert jnp.allclose(value, f_v, atol=5e-2, rtol=1e-2)
    assert jnp.allclose(ent, f_ent, atol=1e-5, rtol=1e-5)

    print("KERNEL_OK")
</pallas_src>

<mosaic_0001>
module attributes {stable_mosaic.version = 11 : i64} {
  func.func @_fused_ac_kernel(%arg0: i32, %arg1: memref<16x128xbf16, #tpu.memory_space<vmem>>, %arg2: memref<4x128xf32, #tpu.memory_space<vmem>>, %arg3: memref<128x16xbf16, #tpu.memory_space<vmem>>, %arg4: memref<128x128xbf16, #tpu.memory_space<vmem>>, %arg5: memref<5x128xbf16, #tpu.memory_space<vmem>>, %arg6: memref<128x5xf32, #tpu.memory_space<vmem>>, %arg7: memref<2x128xf32, #tpu.memory_space<vmem>>) attributes {dimension_semantics = [#tpu.dimension_semantics<parallel>], iteration_bounds = array<i64: 2>, scalar_prefetch = 0 : i64, scratch_operands = 0 : i64, tpu.core_type = #tpu.core_type<tc>, window_params = [{transform_indices = @transform_0, window_bounds = array<i64: 16, 128>}, {transform_indices = @transform_1, window_bounds = array<i64: 4, 128>}, {pipeline_mode = #tpu.pipeline_mode<synchronous>, transform_indices = @transform_2, window_bounds = array<i64: 128, 16>}, {pipeline_mode = #tpu.pipeline_mode<synchronous>, transform_indices = @transform_3, window_bounds = array<i64: 128, 128>}, {pipeline_mode = #tpu.pipeline_mode<synchronous>, transform_indices = @transform_4, window_bounds = array<i64: 5, 128>}, {pipeline_mode = #tpu.pipeline_mode<synchronous>, transform_indices = @transform_5, window_bounds = array<i64: 128, 5>}, {transform_indices = @transform_6, window_bounds = array<i64: 2, 128>}]} {
    %c0 = arith.constant 0 : index
    %c0_0 = arith.constant 0 : index
    %0 = vector.load %arg6[%c0, %c0_0] : memref<128x5xf32, #tpu.memory_space<vmem>>, vector<128x1xf32>
    %c0_1 = arith.constant 0 : index
    %c1 = arith.constant 1 : index
    %1 = vector.load %arg6[%c0_1, %c1] : memref<128x5xf32, #tpu.memory_space<vmem>>, vector<128x1xf32>
    %c0_2 = arith.constant 0 : index
    %c2 = arith.constant 2 : index
    %2 = vector.load %arg6[%c0_2, %c2] : memref<128x5xf32, #tpu.memory_space<vmem>>, vector<5x1xf32>
    %c0_3 = arith.constant 0 : index
    %c3 = arith.constant 3 : index
    %3 = vector.load %arg6[%c0_3, %c3] : memref<128x5xf32, #tpu.memory_space<vmem>>, vector<4x1xf32>
    %c0_4 = arith.constant 0 : index
    %c4 = arith.constant 4 : index
    %4 = vector.load %arg6[%c0_4, %c4] : memref<128x5xf32, #tpu.memory_space<vmem>>, vector<1x1xf32>
    %c0_5 = arith.constant 0 : index
    %c0_6 = arith.constant 0 : index
    %5 = vector.load %arg3[%c0_5, %c0_6] : memref<128x16xbf16, #tpu.memory_space<vmem>>, vector<128x16xbf16>
    %c0_7 = arith.constant 0 : index
    %c0_8 = arith.constant 0 : index
    %6 = vector.load %arg1[%c0_7, %c0_8] : memref<16x128xbf16, #tpu.memory_space<vmem>>, vector<16x128xbf16>
    %cst = arith.constant dense<0.000000e+00> : vector<128x128xf32>
    %7 = tpu.matmul %5, %6, %cst {dimension_numbers = #tpu.dot_dimension_numbers<[1], [0], [0], [1], [0, 0, 1, 1], [], []>} : vector<128x16xbf16>, vector<16x128xbf16>, vector<128x128xf32> -> vector<128x128xf32>
    %8 = vector.broadcast %0 : vector<128x1xf32> to vector<128x128xf32>
    %9 = arith.addf %7, %8 : vector<128x128xf32>
    %10 = math.tanh %9 : vector<128x128xf32>
    %c0_9 = arith.constant 0 : index
    %c0_10 = arith.constant 0 : index
    %11 = vector.load %arg4[%c0_9, %c0_10] : memref<128x128xbf16, #tpu.memory_space<vmem>>, vector<128x128xbf16>
    %12 = arith.truncf %10 : vector<128x128xf32> to vector<128x128xbf16>
    %cst_11 = arith.constant dense<0.000000e+00> : vector<128x128xf32>
    %13 = tpu.matmul %11, %12, %cst_11 {dimension_numbers = #tpu.dot_dimension_numbers<[1], [0], [0], [1], [0, 0, 1, 1], [], []>} : vector<128x128xbf16>, vector<128x128xbf16>, vector<128x128xf32> -> vector<128x128xf32>
    %14 = vector.broadcast %1 : vector<128x1xf32> to vector<128x128xf32>
    %15 = arith.addf %13, %14 : vector<128x128xf32>
    %16 = math.tanh %15 : vector<128x128xf32>
    %c0_12 = arith.constant 0 : index
    %c0_13 = arith.constant 0 : index
    %17 = vector.load %arg5[%c0_12, %c0_13] : memref<5x128xbf16, #tpu.memory_space<vmem>>, vector<5x128xbf16>
    %18 = arith.truncf %16 : vector<128x128xf32> to vector<128x128xbf16>
    %cst_14 = arith.constant dense<0.000000e+00> : vector<5x128xf32>
    %19 = tpu.matmul %17, %18, %cst_14 {dimension_numbers = #tpu.dot_dimension_numbers<[1], [0], [0], [1], [0, 0, 1, 1], [], []>} : vector<5x128xbf16>, vector<128x128xbf16>, vector<5x128xf32> -> vector<5x128xf32>
    %20 = vector.broadcast %2 : vector<5x1xf32> to vector<5x128xf32>
    %21 = arith.addf %19, %20 : vector<5x128xf32>
    %22 = vector.extract_strided_slice %21 {offsets = [0, 0], sizes = [4, 128], strides = [1, 1]} : vector<5x128xf32> to vector<4x128xf32>
    %23 = math.tanh %22 : vector<4x128xf32>
    %24 = vector.extract_strided_slice %21 {offsets = [4, 0], sizes = [1, 128], strides = [1, 1]} : vector<5x128xf32> to vector<1x128xf32>
    %c0_15 = arith.constant 0 : index
    %c0_16 = arith.constant 0 : index
    %25 = vector.load %arg2[%c0_15, %c0_16] : memref<4x128xf32, #tpu.memory_space<vmem>>, vector<4x128xf32>
    %26 = arith.subf %25, %23 : vector<4x128xf32>
    %27 = arith.mulf %26, %26 : vector<4x128xf32>
    %28 = vector.broadcast %3 : vector<4x1xf32> to vector<4x128xf32>
    %29 = arith.mulf %27, %28 : vector<4x128xf32>
    %cst_17 = arith.constant dense<0.000000e+00> : vector<128xf32>
    %30 = vector.multi_reduction <add>, %29, %cst_17 [0] : vector<4x128xf32> to vector<128xf32>
    %31 = vector.shape_cast %30 : vector<128xf32> to vector<1x128xf32>
    %cst_18 = arith.constant 5.000000e-01 : f32
    %32 = vector.broadcast %cst_18 : f32 to vector<1x128xf32>
    %33 = arith.mulf %32, %31 : vector<1x128xf32>
    %34 = vector.broadcast %4 : vector<1x1xf32> to vector<1x128xf32>
    %35 = arith.subf %34, %33 : vector<1x128xf32>
    %c0_19 = arith.constant 0 : index
    %c0_20 = arith.constant 0 : index
    %36 = vector.load %arg7[%c0_19, %c0_20] : memref<2x128xf32, #tpu.memory_space<vmem>>, vector<1x128xf32>
    tpu.vector_store %arg7[%c0_19, %c0_20], %35 {strides = array<i32>} : memref<2x128xf32, #tpu.memory_space<vmem>>, vector<1x128xf32>,
    %c1_21 = arith.constant 1 : index
    %c0_22 = arith.constant 0 : index
    %37 = vector.load %arg7[%c1_21, %c0_22] : memref<2x128xf32, #tpu.memory_space<vmem>>, vector<1x128xf32>
    tpu.vector_store %arg7[%c1_21, %c0_22], %24 {strides = array<i32>} : memref<2x128xf32, #tpu.memory_space<vmem>>, vector<1x128xf32>,
    return
  }
  func.func @transform_0(%arg0: i32) -> (i32, i32) {
    %c0_i32 = arith.constant 0 : i32
    %c0_i32_0 = arith.constant 0 : i32
    return %c0_i32, %arg0 : i32, i32
  }
  func.func @transform_1(%arg0: i32) -> (i32, i32) {
    %c0_i32 = arith.constant 0 : i32
    %c0_i32_0 = arith.constant 0 : i32
    return %c0_i32, %arg0 : i32, i32
  }
  func.func @transform_2(%arg0: i32) -> (i32, i32) {
    %c0_i32 = arith.constant 0 : i32
    %c0_i32_0 = arith.constant 0 : i32
    %c0_i32_1 = arith.constant 0 : i32
    return %c0_i32, %c0_i32_0 : i32, i32
  }
  func.func @transform_3(%arg0: i32) -> (i32, i32) {
    %c0_i32 = arith.constant 0 : i32
    %c0_i32_0 = arith.constant 0 : i32
    %c0_i32_1 = arith.constant 0 : i32
    return %c0_i32, %c0_i32_0 : i32, i32
  }
  func.func @transform_4(%arg0: i32) -> (i32, i32) {
    %c0_i32 = arith.constant 0 : i32
    %c0_i32_0 = arith.constant 0 : i32
    %c0_i32_1 = arith.constant 0 : i32
    return %c0_i32, %c0_i32_0 : i32, i32
  }
  func.func @transform_5(%arg0: i32) -> (i32, i32) {
    %c0_i32 = arith.constant 0 : i32
    %c0_i32_0 = arith.constant 0 : i32
    %c0_i32_1 = arith.constant 0 : i32
    return %c0_i32, %c0_i32_0 : i32, i32
  }
  func.func @transform_6(%arg0: i32) -> (i32, i32) {
    %c0_i32 = arith.constant 0 : i32
    %c0_i32_0 = arith.constant 0 : i32
    return %c0_i32, %arg0 : i32, i32
  }
}

</mosaic_0001>

<llo_original>
// kernel: actor_critic_evaluate.1
$region0: #{actor_critic_evaluate.1}
  #allocation0 [shape = 'u32[]', space=smem, size = 0x4, offset = 0x4, fixed_abs, tag = 'smem constant byte address 0x4 - core index']
  #allocation1 [shape = 'u32[144,128]{1,0:T(1,128)}', space=vmem, size = 0x12000, scoped, tag = 'internal scratch']
  %s0 = inlined_call_operand.vmem [shape: bf16[16,256], index: 0, kind: input, shape index: {}]
  %s1 = inlined_call_operand.vmem [shape: f32[4,256], index: 1, kind: input, shape index: {}]
  %s2 = inlined_call_operand.vmem [shape: bf16[128,16], index: 2, kind: input, shape index: {}]
  %s3 = inlined_call_operand.vmem [shape: bf16[128,128], index: 3, kind: input, shape index: {}]
  %s4 = inlined_call_operand.vmem [shape: bf16[5,128], index: 4, kind: input, shape index: {}]
  %s5 = inlined_call_operand.vmem [shape: f32[128,5], index: 5, kind: input, shape index: {}]
  %s6 = inlined_call_operand.vmem [shape: f32[2,256], index: 6, kind: output, shape index: {}]
  %s7 = sld [smem:[#allocation0]]
  $region98: #{actor_critic_evaluate.1} parent=0
    _
  %s9 = ssub.s32 1, %s7
  %s10 = scalar_select 0, %s9, %s7
  $region1: #{actor_critic_evaluate.1} parent=0
    #allocation2 [shape = 'u8[8192]{0}', space=vmem, size = 0x2000, scoped, tag = 'input window, operand 0']
    loop: start=0, step=1, limit=4
    $region2: #{actor_critic_evaluate.1} parent=1 // loop_pre_header
      _
    $region3: #{actor_critic_evaluate.1} parent=1 // loop_header
      %s12 = sphi 0, %s16
      %p13 = scmp.ge.s32.totalorder %s12, 4
      %s22 = sphi 0, %s24
      %s25 = sphi 0, %s22
      %s26 = sphi 0, %s25
      %s42 = sphi 0, %s26
      %s48 = sphi 0, %s50
      %s51 = sphi 0, %s48
      %s52 = sphi 0, %s51
      %s68 = sphi 0, %s52
      %s72 = sphi 0, %s72
      %s74 = sphi 0, %s72
      %s75 = sphi 0, %s74
      %s89 = sphi 0, %s75
      %s93 = sphi 0, %s93
      %s95 = sphi 0, %s93
      %s96 = sphi 0, %s95
      %s110 = sphi 0, %s96
      %s114 = sphi 0, %s114
      %s116 = sphi 0, %s114
      %s117 = sphi 0, %s116
      %s131 = sphi 0, %s117
      %s135 = sphi 0, %s135
      %s137 = sphi 0, %s135
      %s138 = sphi 0, %s137
      %s152 = sphi 0, %s138
      %s158 = sphi 0, %s160
      %s161 = sphi 0, %s158
      %s162 = sphi 0, %s161
      %s178 = sphi 0, %s162
    $region4: #{actor_critic_evaluate.1} parent=1 // loop_header_branch
      %15 = sbr.rel (%p13) target = $region8
    $region5: #{actor_critic_evaluate.1} parent=1 // loop_body
      %s17 = ssub.s32 %s12, 1
      %s18 = ssub.s32 %s12, 2
      %s19 = sadd.s32 %s12, 1
      %s20 = ssub.s32 %s12, %s19
      %p21 = scmp.eq.s32.totalorder %s20, 0
      %s23 = sadd.s32 %s22, 1
      %s24 = scalar_select %p21, %s22, %s23
      %p27 = pneg %p21
      %p28 = scmp.eq.s32.totalorder %s12, 1
      %p29 = por %p27, %p28
      %p30 = scmp.ne.s32.totalorder %s22, %s25
      %p31 = scmp.eq.s32.totalorder %s12, 0
      %p32 = por %p30, %p31
      %p33 = scmp.ne.s32.totalorder %s22, %s25
      %p34 = scmp.eq.s32.totalorder %s17, 1
      %p35 = por %p33, %p34
      %p36 = scmp.ne.s32.totalorder %s25, %s26
      %p37 = scmp.eq.s32.totalorder %s17, 0
      %p38 = por %p36, %p37
      %p39 = scmp.ne.s32.totalorder %s25, %s26
      %p40 = scmp.eq.s32.totalorder %s18, 1
      %p41 = por %p39, %p40
      %p43 = scmp.ne.s32.totalorder %s26, %s42
      %p44 = scmp.eq.s32.totalorder %s18, 0
      %p45 = por %p43, %p44
      %s46 = ssub.s32 %s12, %s19
      %p47 = scmp.eq.s32.totalorder %s46, 0
      %s49 = sadd.s32 %s48, 1
      %s50 = scalar_select %p47, %s48, %s49
      %p53 = pneg %p47
      %p54 = scmp.eq.s32.totalorder %s12, 1
      %p55 = por %p53, %p54
      %p56 = scmp.ne.s32.totalorder %s48, %s51
      %p57 = scmp.eq.s32.totalorder %s12, 0
      %p58 = por %p56, %p57
      %p59 = scmp.ne.s32.totalorder %s48, %s51
      %p60 = scmp.eq.s32.totalorder %s17, 1
      %p61 = por %p59, %p60
      %p62 = scmp.ne.s32.totalorder %s51, %s52
      %p63 = scmp.eq.s32.totalorder %s17, 0
      %p64 = por %p62, %p63
      %p65 = scmp.ne.s32.totalorder %s51, %s52
      %p66 = scmp.eq.s32.totalorder %s18, 1
      %p67 = por %p65, %p66
      %p69 = scmp.ne.s32.totalorder %s52, %s68
      %p70 = scmp.eq.s32.totalorder %s18, 0
      %p71 = por %p69, %p70
      %s73 = sadd.s32 %s72, 1
      %p76 = scmp.eq.s32.totalorder %s12, 1
      %p77 = scmp.ne.s32.totalorder %s72, %s74
      %p78 = scmp.eq.s32.totalorder %s12, 0
      %p79 = por %p77, %p78
      %p80 = scmp.ne.s32.totalorder %s72, %s74
      %p81 = scmp.eq.s32.totalorder %s17, 1
      %p82 = por %p80, %p81
      %p83 = scmp.ne.s32.totalorder %s74, %s75
      %p84 = scmp.eq.s32.totalorder %s17, 0
      %p85 = por %p83, %p84
      %p86 = scmp.ne.s32.totalorder %s74, %s75
      %p87 = scmp.eq.s32.totalorder %s18, 1
      %p88 = por %p86, %p87
      %p90 = scmp.ne.s32.totalorder %s75, %s89
      %p91 = scmp.eq.s32.totalorder %s18, 0
      %p92 = por %p90, %p91
      %s94 = sadd.s32 %s93, 1
      %p97 = scmp.eq.s32.totalorder %s12, 1
      %p98 = scmp.ne.s32.totalorder %s93, %s95
      %p99 = scmp.eq.s32.totalorder %s12, 0
      %p100 = por %p98, %p99
      %p101 = scmp.ne.s32.totalorder %s93, %s95
      %p102 = scmp.eq.s32.totalorder %s17, 1
      %p103 = por %p101, %p102
      %p104 = scmp.ne.s32.totalorder %s95, %s96
      %p105 = scmp.eq.s32.totalorder %s17, 0
      %p106 = por %p104, %p105
      %p107 = scmp.ne.s32.totalorder %s95, %s96
      %p108 = scmp.eq.s32.totalorder %s18, 1
      %p109 = por %p107, %p108
      %p111 = scmp.ne.s32.totalorder %s96, %s110
      %p112 = scmp.eq.s32.totalorder %s18, 0
      %p113 = por %p111, %p112
      %s115 = sadd.s32 %s114, 1
      %p118 = scmp.eq.s32.totalorder %s12, 1
      %p119 = scmp.ne.s32.totalorder %s114, %s116
      %p120 = scmp.eq.s32.totalorder %s12, 0
      %p121 = por %p119, %p120
      %p122 = scmp.ne.s32.totalorder %s114, %s116
      %p123 = scmp.eq.s32.totalorder %s17, 1
      %p124 = por %p122, %p123
      %p125 = scmp.ne.s32.totalorder %s116, %s117
      %p126 = scmp.eq.s32.totalorder %s17, 0
      %p127 = por %p125, %p126
      %p128 = scmp.ne.s32.totalorder %s116, %s117
      %p129 = scmp.eq.s32.totalorder %s18, 1
      %p130 = por %p128, %p129
      %p132 = scmp.ne.s32.totalorder %s117, %s131
      %p133 = scmp.eq.s32.totalorder %s18, 0
      %p134 = por %p132, %p133
      %s136 = sadd.s32 %s135, 1
      %p139 = scmp.eq.s32.totalorder %s12, 1
      %p140 = scmp.ne.s32.totalorder %s135, %s137
      %p141 = scmp.eq.s32.totalorder %s12, 0
      %p142 = por %p140, %p141
      %p143 = scmp.ne.s32.totalorder %s135, %s137
      %p144 = scmp.eq.s32.totalorder %s17, 1
      %p145 = por %p143, %p144
      %p146 = scmp.ne.s32.totalorder %s137, %s138
      %p147 = scmp.eq.s32.totalorder %s17, 0
      %p148 = por %p146, %p147
      %p149 = scmp.ne.s32.totalorder %s137, %s138
      %p150 = scmp.eq.s32.totalorder %s18, 1
      %p151 = por %p149, %p150
      %p153 = scmp.ne.s32.totalorder %s138, %s152
      %p154 = scmp.eq.s32.totalorder %s18, 0
      %p155 = por %p153, %p154
      %s156 = ssub.s32 %s12, %s19
      %p157 = scmp.eq.s32.totalorder %s156, 0
      %s159 = sadd.s32 %s158, 1
      %s160 = scalar_select %p157, %s158, %s159
      %p163 = pneg %p157
      %p164 = scmp.eq.s32.totalorder %s12, 1
      %p165 = por %p163, %p164
      %p166 = scmp.ne.s32.totalorder %s158, %s161
      %p167 = scmp.eq.s32.totalorder %s12, 0
      %p168 = por %p166, %p167
      %p169 = scmp.ne.s32.totalorder %s158, %s161
      %p170 = scmp.eq.s32.totalorder %s17, 1
      %p171 = por %p169, %p170
      %p172 = scmp.ne.s32.totalorder %s161, %s162
      %p173 = scmp.eq.s32.totalorder %s17, 0
      %p174 = por %p172, %p173
      %p175 = scmp.ne.s32.totalorder %s161, %s162
      %p176 = scmp.eq.s32.totalorder %s18, 1
      %p177 = por %p175, %p176
      %p179 = scmp.ne.s32.totalorder %s162, %s178
      %p180 = scmp.eq.s32.totalorder %s18, 0
      %p181 = por %p179, %p180
      %p182 = scmp.le.s32.totalorder 1, %s12
      %p183 = scmp.lt.s32.totalorder %s12, 3
      %p184 = pnand %p182, %p183
      %p185 = pneg %p184
      // Predicated region
      $region9: #{actor_critic_evaluate.1} parent=5 // pred_check
        _
      $region10: #{actor_critic_evaluate.1} parent=5 // pred_check_branch
        %187 = sbr.rel (%p184) target = $region12
      $region11: #{actor_critic_evaluate.1} parent=5 // pred_region
        %s188 = ssub.s32 %s12, 1
        // Predicated region
        $region13: #{actor_critic_evaluate.1} parent=11 // pred_check
          %p189 = pneg %p85
        $region14: #{actor_critic_evaluate.1} parent=11 // pred_check_branch
          %191 = sbr.rel (%p189) target = $region16
        $region15: #{actor_critic_evaluate.1} parent=11 // pred_region
          _
        $region16: #{actor_critic_evaluate.1} parent=11 // pred_fallthru
          _
        // Predicated region
        $region17: #{actor_critic_evaluate.1} parent=11 // pred_check
          %p192 = pneg %p106
        $region18: #{actor_critic_evaluate.1} parent=11 // pred_check_branch
          %194 = sbr.rel (%p192) target = $region20
        $region19: #{actor_critic_evaluate.1} parent=11 // pred_region
          _
        $region20: #{actor_critic_evaluate.1} parent=11 // pred_fallthru
          _
        // Predicated region
        $region21: #{actor_critic_evaluate.1} parent=11 // pred_check
          %p195 = pneg %p127
        $region22: #{actor_critic_evaluate.1} parent=11 // pred_check_branch
          %197 = sbr.rel (%p195) target = $region24
        $region23: #{actor_critic_evaluate.1} parent=11 // pred_region
          _
        $region24: #{actor_critic_evaluate.1} parent=11 // pred_fallthru
          _
        // Predicated region
        $region25: #{actor_critic_evaluate.1} parent=11 // pred_check
          %p198 = pneg %p148
        $region26: #{actor_critic_evaluate.1} parent=11 // pred_check_branch
          %200 = sbr.rel (%p198) target = $region28
        $region27: #{actor_critic_evaluate.1} parent=11 // pred_region
          _
        $region28: #{actor_critic_evaluate.1} parent=11 // pred_fallthru
          _
      $region12: #{actor_critic_evaluate.1} parent=5 // pred_fallthru
        _
      %p201 = scmp.lt.s32.totalorder %s12, 2
      // Predicated region
      $region29: #{actor_critic_evaluate.1} parent=5 // pred_check
        %p202 = pneg %p201
      $region30: #{actor_critic_evaluate.1} parent=5 // pred_check_branch
        %204 = sbr.rel (%p202) target = $region32
      $region31: #{actor_critic_evaluate.1} parent=5 // pred_region
        // Predicated region
        $region33: #{actor_critic_evaluate.1} parent=31 // pred_check
          %p205 = pneg %p32
        $region34: #{actor_critic_evaluate.1} parent=31 // pred_check_branch
          %207 = sbr.rel (%p205) target = $region36
        $region35: #{actor_critic_evaluate.1} parent=31 // pred_region
          %s208 = sand.u32 %s22, 1
          %s209 = sand.u32 %s22, 1
          %s210 = smul.addr %s209, 8
          %s211 = scalar_lea.vmem [#allocation2], %s210
          %s212 = smul.addr %s12, 4
          %s213 = scalar_lea.vmem %s0, %s212
          // Predicated region
          $region37: #{actor_critic_evaluate.1} parent=35 // pred_check
            _
          $region38: #{actor_critic_evaluate.1} parent=35 // pred_check_branch
            %215 = sbr.rel (0) target = $region40
          $region39: #{actor_critic_evaluate.1} parent=35 // pred_region
            // Predicated region
            $region41: #{actor_critic_evaluate.1} parent=39 // pred_check
              _
            $region42: #{actor_critic_evaluate.1} parent=39 // pred_check_branch
              %217 = sbr.rel target = $region44
            $region43: #{actor_critic_evaluate.1} parent=39 // pred_region
              // Predicated region
              $region56: #{actor_critic_evaluate.1} parent=43 // pred_check
                _
              $region57: #{actor_critic_evaluate.1} parent=43 // pred_check_branch
                %235 = sbr.rel (0) target = $region59
              $region58: #{actor_critic_evaluate.1} parent=43 // pred_region
                loop: start=0, step=1, limit=1
                $region60: #{actor_critic_evaluate.1} parent=58 // loop_pre_header
                  _
                $region61: #{actor_critic_evaluate.1} parent=58 // loop_header
                  %s237 = sphi 0, %s241
                  %p238 = scmp.ge.s32.totalorder %s237, 1
                  %s242 = sphi %s213, %s213
                  %s243 = sphi %s211, %s211
                $region62: #{actor_critic_evaluate.1} parent=58 // loop_header_branch
                  %240 = sbr.rel (%p238) target = $region66
                $region63: #{actor_critic_evaluate.1} parent=58 // loop_body
                  _
                $region64: #{actor_critic_evaluate.1} parent=58 // loop_footer
                  %s241 = sadd.s32 1, %s237
                $region65: #{actor_critic_evaluate.1} parent=58 // loop_footer_branch
                  %236 = sbr.rel target = $region61
                $region66: #{actor_critic_evaluate.1} parent=58 // loop_exit
                  _
                %s245 = ssub.s32 16, 1
                loop: start=0, step=1, limit=1
                $region67: #{actor_critic_evaluate.1} parent=58 // loop_pre_header
                  _
                $region68: #{actor_critic_evaluate.1} parent=58 // loop_header
                  %s247 = sphi 0, %s251
                  %p248 = scmp.ge.s32.totalorder %s247, 1
                  %s252 = sphi %s213, %s213
                  %s253 = sphi %s211, %s211
                $region69: #{actor_critic_evaluate.1} parent=58 // loop_header_branch
                  %250 = sbr.rel (%p248) target = $region73
                $region70: #{actor_critic_evaluate.1} parent=58 // loop_body
                  %v254 = vld [vmem:[%s252] sm:%s245]
                  %255 = vst [vmem:[%s253] sm:%s245] %v254
                  %v256 = vld [vmem:[%s252 + $0x8] sm:%s245]
                  %257 = vst [vmem:[%s253 + $0x4] sm:%s245] %v256
                $region71: #{actor_critic_evaluate.1} parent=58 // loop_footer
                  %s251 = sadd.s32 1, %s247
                $region72: #{actor_critic_evaluate.1} parent=58 // loop_footer_branch
                  %246 = sbr.rel target = $region68
                $region73: #{actor_critic_evaluate.1} parent=58 // loop_exit
                  _
              $region59: #{actor_critic_evaluate.1} parent=43 // pred_fallthru
                _
            $region44: #{actor_critic_evaluate.1} parent=39 // pred_fallthru
              _
            // Predicated region
            $region45: #{actor_critic_evaluate.1} parent=39 // pred_check
              _
            $region46: #{actor_critic_evaluate.1} parent=39 // pred_check_branch
              %219 = sbr.rel (0) target = $region48
            $region47: #{actor_critic_evaluate.1} parent=39 // pred_region
              %s221 = ssub.s32 16, 1
              loop: start=0, step=1, limit=1
              $region49: #{actor_critic_evaluate.1} parent=47 // loop_pre_header
                _
              $region50: #{actor_critic_evaluate.1} parent=47 // loop_header
                %s223 = sphi 0, %s227
                %p224 = scmp.ge.s32.totalorder %s223, 1
                %s228 = sphi %s213, %s213
                %s229 = sphi %s211, %s211
              $region51: #{actor_critic_evaluate.1} parent=47 // loop_header_branch
                %226 = sbr.rel (%p224) target = $region55
              $region52: #{actor_critic_evaluate.1} parent=47 // loop_body
                %v230 = vld [vmem:[%s228] sm:%s221]
                %231 = vst [vmem:[%s229] sm:%s221] %v230
                %v232 = vld [vmem:[%s228 + $0x8] sm:%s221]
                %233 = vst [vmem:[%s229 + $0x4] sm:%s221] %v232
              $region53: #{actor_critic_evaluate.1} parent=47 // loop_footer
                %s227 = sadd.s32 1, %s223
              $region54: #{actor_critic_evaluate.1} parent=47 // loop_footer_branch
                %222 = sbr.rel target = $region50
              $region55: #{actor_critic_evaluate.1} parent=47 // loop_exit
                _
            $region48: #{actor_critic_evaluate.1} parent=39 // pred_fallthru
              _
          $region40: #{actor_critic_evaluate.1} parent=35 // pred_fallthru
            _
          %258 = vnop
        $region36: #{actor_critic_evaluate.1} parent=31 // pred_fallthru
          _
        // Predicated region
        $region74: #{actor_critic_evaluate.1} parent=31 // pred_check
          %p259 = pneg %p58
        $region75: #{actor_critic_evaluate.1} parent=31 // pred_check_branch
          %261 = sbr.rel (%p259) target = $region77
        $region76: #{actor_critic_evaluate.1} parent=31 // pred_region
          %p262 = scmp.lt.s32.totalorder %s12, 1
          %s263 = scalar_select %p262, %s12, 1
          %s264 = smul.addr %s263, 4
          %s265 = scalar_lea.vmem %s1, %s264
        $region77: #{actor_critic_evaluate.1} parent=31 // pred_fallthru
          _
      $region32: #{actor_critic_evaluate.1} parent=5 // pred_fallthru
        _
      %p266 = scmp.le.s32.totalorder 1, %s12
      %p267 = scmp.lt.s32.totalorder %s12, 3
      %p268 = pnand %p266, %p267
      %p269 = pneg %p268
      // Predicated region
      $region78: #{actor_critic_evaluate.1} parent=5 // pred_check
        _
      $region79: #{actor_critic_evaluate.1} parent=5 // pred_check_branch
        %271 = sbr.rel (%p268) target = $region81
      $region80: #{actor_critic_evaluate.1} parent=5 // pred_region
        %s272 = ssub.s32 %s12, 1
        %s273 = sand.u32 %s25, 1
        %s274 = sand.u32 %s25, 1
        %s275 = smul.addr %s274, 8
        %s276 = scalar_lea.vmem [#allocation2], %s275
        // Predicated region
        $region82: #{actor_critic_evaluate.1} parent=80 // pred_check
          %p277 = pneg %p38
        $region83: #{actor_critic_evaluate.1} parent=80 // pred_check_branch
          %279 = sbr.rel (%p277) target = $region85
        $region84: #{actor_critic_evaluate.1} parent=80 // pred_region
          _
        $region85: #{actor_critic_evaluate.1} parent=80 // pred_fallthru
          _
        %s280 = sand.u32 %s25, 1
        %s281 = sand.u32 %s25, 1
        %s282 = smul.addr %s281, 8
        %s283 = scalar_lea.vmem [#allocation2], %s282
        %p284 = pneg %p38
        %p285 = pneg %p35
        %p286 = scmp.lt.s32.totalorder %s17, 1
        %s287 = scalar_select %p286, %s17, 1
        %s288 = smul.addr %s287, 4
        %s289 = scalar_lea.vmem %s1, %s288
        %p290 = pneg %p64
        %p291 = pneg %p61
        %p292 = pneg %p85
        %p293 = pneg %p82
        %p294 = pneg %p106
        %p295 = pneg %p103
        %p296 = pneg %p127
        %p297 = pneg %p124
        %p298 = pneg %p148
        %p299 = pneg %p145
        %p300 = pneg %p174
        %p301 = pneg %p171
        %p302 = scmp.lt.s32.totalorder %s17, 1
        %s303 = scalar_select %p302, %s17, 1
        %s304 = smul.addr %s303, 2
        %s305 = scalar_lea.vmem %s6, %s304
        %p306 = scmp.lt.s32.totalorder %s17, 1
        %s307 = scalar_select %p306, %s17, 1
        %s308 = smul.addr %s307, 4
        %s309 = scalar_lea.vmem %s1, %s308
        %p310 = scmp.lt.s32.totalorder %s17, 1
        %s311 = scalar_select %p310, %s17, 1
        %s312 = smul.addr %s311, 2
        %s313 = scalar_lea.vmem %s6, %s312
        %v315 = vld [vmem:[%s5] sm:$0xff]
        %v316 = vld [vmem:[%s5 + $0x8] sm:$0xff]
        %v317 = vld [vmem:[%s5 + $0x10] sm:$0xff]
        %v318 = vld [vmem:[%s5 + $0x18] sm:$0xff]
        %v319 = vld [vmem:[%s5 + $0x20] sm:$0xff]
        %v320 = vld [vmem:[%s5 + $0x28] sm:$0xff]
        %v321 = vld [vmem:[%s5 + $0x30] sm:$0xff]
        %v322 = vld [vmem:[%s5 + $0x38] sm:$0xff]
        %v323 = vld [vmem:[%s5 + $0x40] sm:$0xff]
        %v324 = vld [vmem:[%s5 + $0x48] sm:$0xff]
        %v325 = vld [vmem:[%s5 + $0x50] sm:$0xff]
        %v326 = vld [vmem:[%s5 + $0x58] sm:$0xff]
        %v327 = vld [vmem:[%s5 + $0x60] sm:$0xff]
        %v328 = vld [vmem:[%s5 + $0x68] sm:$0xff]
        %v329 = vld [vmem:[%s5 + $0x70] sm:$0xff]
        %v330 = vld [vmem:[%s5 + $0x78] sm:$0xff]
        %v331 = vld [vmem:[%s5] sm:$0x1f]
        %v332 = vld [vmem:[%s5] sm:$0xf]
        %v333 = vld [vmem:[%s5] sm:$0x1]
        %v334 = vld [vmem:[%s2] sm:$0xf]
        %v335 = vld [vmem:[%s2 + $0x4] sm:$0xf]
        %v336 = vld [vmem:[%s2 + $0x8] sm:$0xf]
        %v337 = vld [vmem:[%s2 + $0xc] sm:$0xf]
        %v338 = vld [vmem:[%s2 + $0x10] sm:$0xf]
        %v339 = vld [vmem:[%s2 + $0x14] sm:$0xf]
        %v340 = vld [vmem:[%s2 + $0x18] sm:$0xf]
        %v341 = vld [vmem:[%s2 + $0x1c] sm:$0xf]
        %v342 = vld [vmem:[%s2 + $0x20] sm:$0xf]
        %v343 = vld [vmem:[%s2 + $0x24] sm:$0xf]
        %v344 = vld [vmem:[%s2 + $0x28] sm:$0xf]
        %v345 = vld [vmem:[%s2 + $0x2c] sm:$0xf]
        %v346 = vld [vmem:[%s2 + $0x30] sm:$0xf]
        %v347 = vld [vmem:[%s2 + $0x34] sm:$0xf]
        %v348 = vld [vmem:[%s2 + $0x38] sm:$0xf]
        %v349 = vld [vmem:[%s2 + $0x3c] sm:$0xf]
        %v350 = vld [vmem:[%s276] sm:$0xf]
        %v351 = vld [vmem:[%s276 + $0x4] sm:$0xf]
        %353 = vset.pattern.permute.xlu0 0
        %354 = vperm.xlu0 %353, %v315
        %v355 = vpop.permute.xlu0 %354
        %358 = vset.pattern.permute.xlu0 0
        %359 = vperm.xlu0 %358, %v316
        %v360 = vpop.permute.xlu0 %359
        %363 = vset.pattern.permute.xlu0 0
        %364 = vperm.xlu0 %363, %v317
        %v365 = vpop.permute.xlu0 %364
        %368 = vset.pattern.permute.xlu0 0
        %369 = vperm.xlu0 %368, %v318
        %v370 = vpop.permute.xlu0 %369
        %373 = vset.pattern.permute.xlu0 0
        %374 = vperm.xlu0 %373, %v319
        %v375 = vpop.permute.xlu0 %374
        %378 = vset.pattern.permute.xlu0 0
        %379 = vperm.xlu0 %378, %v320
        %v380 = vpop.permute.xlu0 %379
        %383 = vset.pattern.permute.xlu0 0
        %384 = vperm.xlu0 %383, %v321
        %v385 = vpop.permute.xlu0 %384
        %388 = vset.pattern.permute.xlu0 0
        %389 = vperm.xlu0 %388, %v322
        %v390 = vpop.permute.xlu0 %389
        %393 = vset.pattern.permute.xlu0 0
        %394 = vperm.xlu0 %393, %v323
        %v395 = vpop.permute.xlu0 %394
        %398 = vset.pattern.permute.xlu0 0
        %399 = vperm.xlu0 %398, %v324
        %v400 = vpop.permute.xlu0 %399
        %403 = vset.pattern.permute.xlu0 0
        %404 = vperm.xlu0 %403, %v325
        %v405 = vpop.permute.xlu0 %404
        %408 = vset.pattern.permute.xlu0 0
        %409 = vperm.xlu0 %408, %v326
        %v410 = vpop.permute.xlu0 %409
        %413 = vset.pattern.permute.xlu0 0
        %414 = vperm.xlu0 %413, %v327
        %v415 = vpop.permute.xlu0 %414
        %418 = vset.pattern.permute.xlu0 0
        %419 = vperm.xlu0 %418, %v328
        %v420 = vpop.permute.xlu0 %419
        %423 = vset.pattern.permute.xlu0 0
        %424 = vperm.xlu0 %423, %v329
        %v425 = vpop.permute.xlu0 %424
        %428 = vset.pattern.permute.xlu0 0
        %429 = vperm.xlu0 %428, %v330
        %v430 = vpop.permute.xlu0 %429
        %v448 = vunpack.c.l.b16 %v334
        %v449 = vunpack.c.l.b16 %v335
        %v450 = vunpack.c.l.b16 %v336
        %v451 = vunpack.c.l.b16 %v337
        %v452 = vunpack.c.l.b16 %v338
        %v453 = vunpack.c.l.b16 %v339
        %v454 = vunpack.c.l.b16 %v340
        %v455 = vunpack.c.l.b16 %v341
        %v456 = vunpack.c.l.b16 %v342
        %v457 = vunpack.c.l.b16 %v343
        %v458 = vunpack.c.l.b16 %v344
        %v459 = vunpack.c.l.b16 %v345
        %v460 = vunpack.c.l.b16 %v346
        %v461 = vunpack.c.l.b16 %v347
        %v462 = vunpack.c.l.b16 %v348
        %v463 = vunpack.c.l.b16 %v349
        %v464 = vpack.c.b16 %v449, %v448
        %v465 = vpack.c.b16 %v451, %v450
        %v466 = vpack.c.b16 %v453, %v452
        %v467 = vpack.c.b16 %v455, %v454
        %v468 = vpack.c.b16 %v457, %v456
        %v469 = vpack.c.b16 %v459, %v458
        %v470 = vpack.c.b16 %v461, %v460
        %v471 = vpack.c.b16 %v463, %v462
        %v474 = vunpack.c.l.b16 %v350
        %v475 = vunpack.c.l.b16 %v351
        %v476 = vpack.c.b16 %v475, %v474
        %vm478 = vcmask 130048
        %v480 = vsel %vm478, %v464, 0
        %v483 = vsel %vm478, %v465, 0
        %v486 = vsel %vm478, %v466, 0
        %v489 = vsel %vm478, %v467, 0
        %v492 = vsel %vm478, %v468, 0
        %v495 = vsel %vm478, %v469, 0
        %v498 = vsel %vm478, %v470, 0
        %v501 = vsel %vm478, %v471, 0
        %503 = vmatprep.subr.bf16.mxu0 0
        %504 = vmatpush1.bf16.msra.mxu0 0
        %505 = vmatprep.subr.bf16.mxu0 0
        %506 = vmatpush1.bf16.msra.mxu0 0
        %507 = vmatprep.subr.bf16.mxu0 0
        %508 = vmatpush1.bf16.msra.mxu0 0
        %509 = vmatprep.subr.bf16.mxu0 0
        %510 = vmatpush1.bf16.msra.mxu0 0
        %511 = vmatprep.subr.bf16.mxu0 0
        %512 = vmatpush1.bf16.msra.mxu0 0
        %513 = vmatprep.subr.bf16.mxu0 0
        %514 = vmatpush1.bf16.msra.mxu0 0
        %515 = vmatprep.subr.bf16.mxu0 0
        %516 = vmatpush1.bf16.msra.mxu0 0
        %517 = vmatprep.subr.bf16.mxu0 0
        %518 = vmatpush1.bf16.msra.mxu0 %v476
        %519 = vmatprep.subr.bf16.mxu0 0
        %520 = vmatpush2.bf16.msra.mxu0 0
        %521 = vmatprep.subr.bf16.mxu0 0
        %522 = vmatpush2.bf16.msra.mxu0 0
        %523 = vmatprep.subr.bf16.mxu0 0
        %524 = vmatpush2.bf16.msra.mxu0 0
        %525 = vmatprep.subr.bf16.mxu0 0
        %526 = vmatpush2.bf16.msra.mxu0 0
        %527 = vmatprep.subr.bf16.mxu0 0
        %528 = vmatpush2.bf16.msra.mxu0 0
        %529 = vmatprep.subr.bf16.mxu0 0
        %530 = vmatpush2.bf16.msra.mxu0 0
        %531 = vmatprep.subr.bf16.mxu0 0
        %532 = vmatpush2.bf16.msra.mxu0 0
        %533 = vmatprep.subr.bf16.mxu0 0
        %534 = vmatpush2.bf16.msra.mxu0 0
        %535 = vmatprep.mubr.bf16.mxu0 0
        %536 = vmatmul.mubr.bf16.gmra.mxu0 %v480
        %v537 = vpop.f32.mrf.mxu0
        %v538 = vadd.f32 %v355, %v537
        %v539 = vpop.f32.mrf.mxu0
        %v540 = vpop.f32.mrf.mxu0
        %v541 = vadd.f32 %v360, %v540
        %v542 = vpop.f32.mrf.mxu0
        %543 = vmatprep.mubr.bf16.mxu0 0
        %544 = vmatmul.mubr.bf16.gmra.mxu0 %v483
        %v545 = vpop.f32.mrf.mxu0
        %v546 = vadd.f32 %v365, %v545
        %v547 = vpop.f32.mrf.mxu0
        %v548 = vpop.f32.mrf.mxu0
        %v549 = vadd.f32 %v370, %v548
        %v550 = vpop.f32.mrf.mxu0
        %551 = vmatprep.mubr.bf16.mxu0 0
        %552 = vmatmul.mubr.bf16.gmra.mxu0 %v486
        %v553 = vpop.f32.mrf.mxu0
        %v554 = vadd.f32 %v375, %v553
        %v555 = vpop.f32.mrf.mxu0
        %v556 = vpop.f32.mrf.mxu0
        %v557 = vadd.f32 %v380, %v556
        %v558 = vpop.f32.mrf.mxu0
        %559 = vmatprep.mubr.bf16.mxu0 0
        %560 = vmatmul.mubr.bf16.gmra.mxu0 %v489
        %v561 = vpop.f32.mrf.mxu0
        %v562 = vadd.f32 %v385, %v561
        %v563 = vpop.f32.mrf.mxu0
        %v564 = vpop.f32.mrf.mxu0
        %v565 = vadd.f32 %v390, %v564
        %v566 = vpop.f32.mrf.mxu0
        %567 = vmatprep.mubr.bf16.mxu0 0
        %568 = vmatmul.mubr.bf16.gmra.mxu0 %v492
        %v569 = vpop.f32.mrf.mxu0
        %v570 = vadd.f32 %v395, %v569
        %v571 = vpop.f32.mrf.mxu0
        %v572 = vpop.f32.mrf.mxu0
        %v573 = vadd.f32 %v400, %v572
        %v574 = vpop.f32.mrf.mxu0
        %575 = vmatprep.mubr.bf16.mxu0 0
        %576 = vmatmul.mubr.bf16.gmra.mxu0 %v495
        %v577 = vpop.f32.mrf.mxu0
        %v578 = vadd.f32 %v405, %v577
        %v579 = vpop.f32.mrf.mxu0
        %v580 = vpop.f32.mrf.mxu0
        %v581 = vadd.f32 %v410, %v580
        %v582 = vpop.f32.mrf.mxu0
        %583 = vmatprep.mubr.bf16.mxu0 0
        %584 = vmatmul.mubr.bf16.gmra.mxu0 %v498
        %v585 = vpop.f32.mrf.mxu0
        %v586 = vadd.f32 %v415, %v585
        %v587 = vpop.f32.mrf.mxu0
        %v588 = vpop.f32.mrf.mxu0
        %v589 = vadd.f32 %v420, %v588
        %v590 = vpop.f32.mrf.mxu0
        %591 = vmatprep.mubr.bf16.mxu0 0
        %592 = vmatmul.mubr.bf16.gmra.mxu0 %v501
        %v593 = vpop.f32.mrf.mxu0
        %v594 = vadd.f32 %v425, %v593
        %v595 = vpop.f32.mrf.mxu0
        %v596 = vpop.f32.mrf.mxu0
        %v597 = vadd.f32 %v430, %v596
        %v598 = vpop.f32.mrf.mxu0
        %599 = vdwg.mxu0
        %v600 = vtanh.pop %v538
        %v601 = vtanh.pop %v541
        %v602 = vtanh.pop %v546
        %v603 = vtanh.pop %v549
        %v604 = vtanh.pop %v554
        %v605 = vtanh.pop %v557
        %v606 = vtanh.pop %v562
        %v607 = vtanh.pop %v565
        %v608 = vtanh.pop %v570
        %v609 = vtanh.pop %v573
        %v610 = vtanh.pop %v578
        %v611 = vtanh.pop %v581
        %v612 = vtanh.pop %v586
        %v613 = vtanh.pop %v589
        %v614 = vtanh.pop %v594
        %v615 = vtanh.pop %v597
        %v616 = vld [vmem:[%s3] sm:$0xf]
        %v617 = vld [vmem:[%s3 + $0x4] sm:$0xf]
        %v618 = vld [vmem:[%s3 + $0x8] sm:$0xf]
        %v619 = vld [vmem:[%s3 + $0xc] sm:$0xf]
        %v620 = vld [vmem:[%s3 + $0x10] sm:$0xf]
        %v621 = vld [vmem:[%s3 + $0x14] sm:$0xf]
        %v622 = vld [vmem:[%s3 + $0x18] sm:$0xf]
        %v623 = vld [vmem:[%s3 + $0x1c] sm:$0xf]
        %v624 = vld [vmem:[%s3 + $0x20] sm:$0xf]
        %v625 = vld [vmem:[%s3 + $0x24] sm:$0xf]
        %v626 = vld [vmem:[%s3 + $0x28] sm:$0xf]
        %v627 = vld [vmem:[%s3 + $0x2c] sm:$0xf]
        %v628 = vld [vmem:[%s3 + $0x30] sm:$0xf]
        %v629 = vld [vmem:[%s3 + $0x34] sm:$0xf]
        %v630 = vld [vmem:[%s3 + $0x38] sm:$0xf]
        %v631 = vld [vmem:[%s3 + $0x3c] sm:$0xf]
        %v632 = vpack.c.bf16 %v601, %v600
        %v633 = vpack.c.bf16 %v603, %v602
        %v634 = vpack.c.bf16 %v605, %v604
        %v635 = vpack.c.bf16 %v607, %v606
        %v636 = vpack.c.bf16 %v609, %v608
        %v637 = vpack.c.bf16 %v611, %v610
        %v638 = vpack.c.bf16 %v613, %v612
        %v639 = vpack.c.bf16 %v615, %v614
        %640 = vset.pattern.permute.xlu0 1
        %641 = vperm.xlu0 %640, %v315
        %v642 = vpop.permute.xlu0 %641
        %644 = vset.pattern.permute.xlu0 1
        %645 = vperm.xlu0 %644, %v316
        %v646 = vpop.permute.xlu0 %645
        %648 = vset.pattern.permute.xlu0 1
        %649 = vperm.xlu0 %648, %v317
        %v650 = vpop.permute.xlu0 %649
        %652 = vset.pattern.permute.xlu0 1
        %653 = vperm.xlu0 %652, %v318
        %v654 = vpop.permute.xlu0 %653
        %656 = vset.pattern.permute.xlu0 1
        %657 = vperm.xlu0 %656, %v319
        %v658 = vpop.permute.xlu0 %657
        %660 = vset.pattern.permute.xlu0 1
        %661 = vperm.xlu0 %660, %v320
        %v662 = vpop.permute.xlu0 %661
        %664 = vset.pattern.permute.xlu0 1
        %665 = vperm.xlu0 %664, %v321
        %v666 = vpop.permute.xlu0 %665
        %668 = vset.pattern.permute.xlu0 1
        %669 = vperm.xlu0 %668, %v322
        %v670 = vpop.permute.xlu0 %669
        %672 = vset.pattern.permute.xlu0 1
        %673 = vperm.xlu0 %672, %v323
        %v674 = vpop.permute.xlu0 %673
        %676 = vset.pattern.permute.xlu0 1
        %677 = vperm.xlu0 %676, %v324
        %v678 = vpop.permute.xlu0 %677
        %680 = vset.pattern.permute.xlu0 1
        %681 = vperm.xlu0 %680, %v325
        %v682 = vpop.permute.xlu0 %681
        %684 = vset.pattern.permute.xlu0 1
        %685 = vperm.xlu0 %684, %v326
        %v686 = vpop.permute.xlu0 %685
        %688 = vset.pattern.permute.xlu0 1
        %689 = vperm.xlu0 %688, %v327
        %v690 = vpop.permute.xlu0 %689
        %692 = vset.pattern.permute.xlu0 1
        %693 = vperm.xlu0 %692, %v328
        %v694 = vpop.permute.xlu0 %693
        %696 = vset.pattern.permute.xlu0 1
        %697 = vperm.xlu0 %696, %v329
        %v698 = vpop.permute.xlu0 %697
        %700 = vset.pattern.permute.xlu0 1
        %701 = vperm.xlu0 %700, %v330
        %v702 = vpop.permute.xlu0 %701
        %v720 = vunpack.c.l.b16 %v616
        %v721 = vunpack.c.l.b16 %v617
        %v722 = vunpack.c.l.b16 %v618
        %v723 = vunpack.c.l.b16 %v619
        %v724 = vunpack.c.l.b16 %v620
        %v725 = vunpack.c.l.b16 %v621
        %v726 = vunpack.c.l.b16 %v622
        %v727 = vunpack.c.l.b16 %v623
        %v728 = vunpack.c.l.b16 %v624
        %v729 = vunpack.c.l.b16 %v625
        %v730 = vunpack.c.l.b16 %v626
        %v731 = vunpack.c.l.b16 %v627
        %v732 = vunpack.c.l.b16 %v628
        %v733 = vunpack.c.l.b16 %v629
        %v734 = vunpack.c.l.b16 %v630
        %v735 = vunpack.c.l.b16 %v631
        %v736 = vpack.c.b16 %v721, %v720
        %v737 = vpack.c.b16 %v723, %v722
        %v738 = vpack.c.b16 %v725, %v724
        %v739 = vpack.c.b16 %v727, %v726
        %v740 = vpack.c.b16 %v729, %v728
        %v741 = vpack.c.b16 %v731, %v730
        %v742 = vpack.c.b16 %v733, %v732
        %v743 = vpack.c.b16 %v735, %v734
        %752 = vmatprep.subr.bf16.mxu0 0
        %753 = vmatpush1.bf16.msra.mxu0 %v639
        %754 = vmatprep.subr.bf16.mxu0 0
        %755 = vmatpush1.bf16.msra.mxu0 %v638
        %756 = vmatprep.subr.bf16.mxu0 0
        %757 = vmatpush1.bf16.msra.mxu0 %v637
        %758 = vmatprep.subr.bf16.mxu0 0
        %759 = vmatpush1.bf16.msra.mxu0 %v636
        %760 = vmatprep.subr.bf16.mxu0 0
        %761 = vmatpush1.bf16.msra.mxu0 %v635
        %762 = vmatprep.subr.bf16.mxu0 0
        %763 = vmatpush1.bf16.msra.mxu0 %v634
        %764 = vmatprep.subr.bf16.mxu0 0
        %765 = vmatpush1.bf16.msra.mxu0 %v633
        %766 = vmatprep.subr.bf16.mxu0 0
        %767 = vmatpush1.bf16.msra.mxu0 %v632
        %768 = vmatprep.subr.bf16.mxu0 0
        %769 = vmatpush2.bf16.msra.mxu0 0
        %770 = vmatprep.subr.bf16.mxu0 0
        %771 = vmatpush2.bf16.msra.mxu0 0
        %772 = vmatprep.subr.bf16.mxu0 0
        %773 = vmatpush2.bf16.msra.mxu0 0
        %774 = vmatprep.subr.bf16.mxu0 0
        %775 = vmatpush2.bf16.msra.mxu0 0
        %776 = vmatprep.subr.bf16.mxu0 0
        %777 = vmatpush2.bf16.msra.mxu0 0
        %778 = vmatprep.subr.bf16.mxu0 0
        %779 = vmatpush2.bf16.msra.mxu0 0
        %780 = vmatprep.subr.bf16.mxu0 0
        %781 = vmatpush2.bf16.msra.mxu0 0
        %782 = vmatprep.subr.bf16.mxu0 0
        %783 = vmatpush2.bf16.msra.mxu0 0
        %784 = vmatprep.mubr.bf16.mxu0 0
        %785 = vmatmul.mubr.bf16.gmra.mxu0 %v736
        %v786 = vpop.f32.mrf.mxu0
        %v787 = vadd.f32 %v642, %v786
        %v788 = vpop.f32.mrf.mxu0
        %v789 = vpop.f32.mrf.mxu0
        %v790 = vadd.f32 %v646, %v789
        %v791 = vpop.f32.mrf.mxu0
        %792 = vmatprep.mubr.bf16.mxu0 0
        %793 = vmatmul.mubr.bf16.gmra.mxu0 %v737
        %v794 = vpop.f32.mrf.mxu0
        %v795 = vadd.f32 %v650, %v794
        %v796 = vpop.f32.mrf.mxu0
        %v797 = vpop.f32.mrf.mxu0
        %v798 = vadd.f32 %v654, %v797
        %v799 = vpop.f32.mrf.mxu0
        %800 = vmatprep.mubr.bf16.mxu0 0
        %801 = vmatmul.mubr.bf16.gmra.mxu0 %v738
        %v802 = vpop.f32.mrf.mxu0
        %v803 = vadd.f32 %v658, %v802
        %v804 = vpop.f32.mrf.mxu0
        %v805 = vpop.f32.mrf.mxu0
        %v806 = vadd.f32 %v662, %v805
        %v807 = vpop.f32.mrf.mxu0
        %808 = vmatprep.mubr.bf16.mxu0 0
        %809 = vmatmul.mubr.bf16.gmra.mxu0 %v739
        %v810 = vpop.f32.mrf.mxu0
        %v811 = vadd.f32 %v666, %v810
        %v812 = vpop.f32.mrf.mxu0
        %v813 = vpop.f32.mrf.mxu0
        %v814 = vadd.f32 %v670, %v813
        %v815 = vpop.f32.mrf.mxu0
        %816 = vmatprep.mubr.bf16.mxu0 0
        %817 = vmatmul.mubr.bf16.gmra.mxu0 %v740
        %v818 = vpop.f32.mrf.mxu0
        %v819 = vadd.f32 %v674, %v818
        %v820 = vpop.f32.mrf.mxu0
        %v821 = vpop.f32.mrf.mxu0
        %v822 = vadd.f32 %v678, %v821
        %v823 = vpop.f32.mrf.mxu0
        %824 = vmatprep.mubr.bf16.mxu0 0
        %825 = vmatmul.mubr.bf16.gmra.mxu0 %v741
        %v826 = vpop.f32.mrf.mxu0
        %v827 = vadd.f32 %v682, %v826
        %v828 = vpop.f32.mrf.mxu0
        %v829 = vpop.f32.mrf.mxu0
        %v830 = vadd.f32 %v686, %v829
        %v831 = vpop.f32.mrf.mxu0
        %832 = vmatprep.mubr.bf16.mxu0 0
        %833 = vmatmul.mubr.bf16.gmra.mxu0 %v742
        %v834 = vpop.f32.mrf.mxu0
        %v835 = vadd.f32 %v690, %v834
        %v836 = vpop.f32.mrf.mxu0
        %v837 = vpop.f32.mrf.mxu0
        %v838 = vadd.f32 %v694, %v837
        %v839 = vpop.f32.mrf.mxu0
        %840 = vmatprep.mubr.bf16.mxu0 0
        %841 = vmatmul.mubr.bf16.gmra.mxu0 %v743
        %v842 = vpop.f32.mrf.mxu0
        %v843 = vadd.f32 %v698, %v842
        %v844 = vpop.f32.mrf.mxu0
        %v845 = vpop.f32.mrf.mxu0
        %v846 = vadd.f32 %v702, %v845
        %v847 = vpop.f32.mrf.mxu0
        %848 = vdwg.mxu0
        %v849 = vtanh.pop %v787
        %v850 = vtanh.pop %v790
        %v851 = vtanh.pop %v795
        %v852 = vtanh.pop %v798
        %v853 = vtanh.pop %v803
        %v854 = vtanh.pop %v806
        %v855 = vtanh.pop %v811
        %v856 = vtanh.pop %v814
        %v857 = vtanh.pop %v819
        %v858 = vtanh.pop %v822
        %v859 = vtanh.pop %v827
        %v860 = vtanh.pop %v830
        %v861 = vtanh.pop %v835
        %v862 = vtanh.pop %v838
        %v863 = vtanh.pop %v843
        %v864 = vtanh.pop %v846
        %v865 = vld [vmem:[%s4] sm:$0x7]
        %v866 = vpack.c.bf16 %v850, %v849
        %v867 = vpack.c.bf16 %v852, %v851
        %v868 = vpack.c.bf16 %v854, %v853
        %v869 = vpack.c.bf16 %v856, %v855
        %v870 = vpack.c.bf16 %v858, %v857
        %v871 = vpack.c.bf16 %v860, %v859
        %v872 = vpack.c.bf16 %v862, %v861
        %v873 = vpack.c.bf16 %v864, %v863
        %875 = vset.pattern.permute.xlu0 2
        %876 = vperm.xlu0 %875, %v331
        %v877 = vpop.permute.xlu0 %876
        %879 = vmatprep.subr.bf16.mxu0 0
        %880 = vmatpush1.bf16.msra.mxu0 %v873
        %881 = vmatprep.subr.bf16.mxu0 0
        %882 = vmatpush1.bf16.msra.mxu0 %v872
        %883 = vmatprep.subr.bf16.mxu0 0
        %884 = vmatpush1.bf16.msra.mxu0 %v871
        %885 = vmatprep.subr.bf16.mxu0 0
        %886 = vmatpush1.bf16.msra.mxu0 %v870
        %887 = vmatprep.subr.bf16.mxu0 0
        %888 = vmatpush1.bf16.msra.mxu0 %v869
        %889 = vmatprep.subr.bf16.mxu0 0
        %890 = vmatpush1.bf16.msra.mxu0 %v868
        %891 = vmatprep.subr.bf16.mxu0 0
        %892 = vmatpush1.bf16.msra.mxu0 %v867
        %893 = vmatprep.subr.bf16.mxu0 0
        %894 = vmatpush1.bf16.msra.mxu0 %v866
        %895 = vmatprep.subr.bf16.mxu0 0
        %896 = vmatpush2.bf16.msra.mxu0 0
        %897 = vmatprep.subr.bf16.mxu0 0
        %898 = vmatpush2.bf16.msra.mxu0 0
        %899 = vmatprep.subr.bf16.mxu0 0
        %900 = vmatpush2.bf16.msra.mxu0 0
        %901 = vmatprep.subr.bf16.mxu0 0
        %902 = vmatpush2.bf16.msra.mxu0 0
        %903 = vmatprep.subr.bf16.mxu0 0
        %904 = vmatpush2.bf16.msra.mxu0 0
        %905 = vmatprep.subr.bf16.mxu0 0
        %906 = vmatpush2.bf16.msra.mxu0 0
        %907 = vmatprep.subr.bf16.mxu0 0
        %908 = vmatpush2.bf16.msra.mxu0 0
        %909 = vmatprep.subr.bf16.mxu0 0
        %910 = vmatpush2.bf16.msra.mxu0 0
        %911 = vmatprep.mubr.bf16.mxu0 0
        %912 = vmatmul.mubr.bf16.gmra.mxu0 %v865
        %v913 = vpop.f32.mrf.mxu0
        %v914 = vadd.f32 %v877, %v913
        %v915 = vpop.f32.mrf.mxu0
        %v916 = vpop.f32.mrf.mxu0
        %v917 = vpop.f32.mrf.mxu0
        %918 = vdwg.mxu0
        %v919 = vtanh.pop %v914
        %v920 = vld [vmem:[%s309] sm:$0xf]
        %v921 = vsub.f32 %v920, %v919
        %v922 = vmul.f32 %v921, %v921
        %924 = vset.pattern.permute.xlu0 3
        %925 = vperm.xlu0 %924, %v332
        %v926 = vpop.permute.xlu0 %925
        %v928 = vmul.f32 %v922, %v926
        %vm929 = vcmask 1043456
        %v930 = vsel %vm929, %v928, 0.0
        %v931 = vrot.slane %v930, 4
        %v932 = vadd.f32 %v930, %v931
        %v933 = vrot.slane %v932, 2
        %v934 = vadd.f32 %v932, %v933
        %v935 = vrot.slane %v934, 1
        %v936 = vadd.f32 %v934, %v935
        %v937 = vmul.f32 %v936, 0.5
        %939 = vset.pattern.permute.xlu0 4
        %940 = vperm.xlu0 %939, %v333
        %v941 = vpop.permute.xlu0 %940
        %v943 = vsub.f32 %v941, %v937
        %944 = vst [vmem:[%s313] sm:$0x1] %v943
        %945 = vst [vmem:[%s313 - $0x3] sm:$0x10] %v914
        %p946 = scmp.lt.s32.totalorder %s17, 1
        %s947 = scalar_select %p946, %s17, 1
        %s948 = smul.addr %s947, 2
        %s949 = scalar_lea.vmem %s6, %s948
        // Predicated region
        $region86: #{actor_critic_evaluate.1} parent=80 // pred_check
          %p950 = pneg %p171
        $region87: #{actor_critic_evaluate.1} parent=80 // pred_check_branch
          %952 = sbr.rel (%p950) target = $region89
        $region88: #{actor_critic_evaluate.1} parent=80 // pred_region
          _
        $region89: #{actor_critic_evaluate.1} parent=80 // pred_fallthru
          _
      $region81: #{actor_critic_evaluate.1} parent=5 // pred_fallthru
        _
      %p953 = scmp.le.s32.totalorder 2, %s12
      // Predicated region
      $region90: #{actor_critic_evaluate.1} parent=5 // pred_check
        %p954 = pneg %p953
      $region91: #{actor_critic_evaluate.1} parent=5 // pred_check_branch
        %956 = sbr.rel (%p954) target = $region93
      $region92: #{actor_critic_evaluate.1} parent=5 // pred_region
        %s957 = ssub.s32 %s12, 2
        // Predicated region
        $region94: #{actor_critic_evaluate.1} parent=92 // pred_check
          %p958 = pneg %p177
        $region95: #{actor_critic_evaluate.1} parent=92 // pred_check_branch
          %960 = sbr.rel (%p958) target = $region97
        $region96: #{actor_critic_evaluate.1} parent=92 // pred_region
          %p961 = scmp.lt.s32.totalorder %s18, 1
          %s962 = scalar_select %p961, %s18, 1
          %s963 = smul.addr %s962, 2
          %s964 = scalar_lea.vmem %s6, %s963
        $region97: #{actor_critic_evaluate.1} parent=92 // pred_fallthru
          _
      $region93: #{actor_critic_evaluate.1} parent=5 // pred_fallthru
        _
    $region6: #{actor_critic_evaluate.1} parent=1 // loop_footer
      %s16 = sadd.s32 1, %s12
    $region7: #{actor_critic_evaluate.1} parent=1 // loop_footer_branch
      %11 = sbr.rel target = $region3
    $region8: #{actor_critic_evaluate.1} parent=1 // loop_exit
      _

</llo_original>
